<compile_context>
chip_gen: v7x
topology: tpu7x:2x2x1
jax: 0.10.0
libtpu: 0.0.40
codegen_flags: <defaults>
</compile_context>

<pallas_src>
import functools

import jax
import jax.numpy as jnp
from jax.experimental import pallas as pl
from jax.experimental.pallas import tpu as pltpu

N_DATAPOINTS = 2
HIDDEN = 2 * N_DATAPOINTS
NEG_SLOPE = 0.01          # PyTorch nn.LeakyReLU default
STRIP = 8                 # sublanes processed per inner-loop iteration

# (in_features, out_features) of the four Linear layers.
LAYER_DIMS = ((N_DATAPOINTS, HIDDEN), (HIDDEN, HIDDEN),
              (HIDDEN, HIDDEN), (HIDDEN, 1))

# Static offsets of each layer's weights / biases inside the packed slab.
_offs = []
_cur = 0
for _nin, _nout in LAYER_DIMS:
    _offs.append((_cur, _cur + _nin * _nout))   # (w_offset, b_offset)
    _cur += _nin * _nout + _nout
LAYER_OFFSETS = tuple(_offs)
WB_LEN = _cur          # 57 floats total
WB_PAD = 64            # padded packed length (1-D SMEM slab)


def _leaky_relu(v):
    # 2 VPU ops (mul + max) instead of 3 (cmp + mul + select).
    return jnp.maximum(v, NEG_SLOPE * v)


def lsd_kernel(wb_ref, x_ref, o_ref):
    """wb_ref: (WB_PAD,) f32 in SMEM (packed weights + biases, resident).
       x_ref : (N_DATAPOINTS, TS, LANES) f32 tile (batch on sublanes+lanes).
       o_ref : (TS, LANES) f32 tile."""
    ts = o_ref.shape[0]
    n_layers = len(LAYER_DIMS)

    def strip_body(i, carry):
        # Small sublane strip -> every intermediate of the chain fits in vregs;
        # only the final layer result is stored back to VMEM.
        base = pl.multiple_of(i * STRIP, STRIP)
        rows = pl.ds(base, STRIP)

        # Input features for this strip; each h[k] is a (STRIP, LANES) slab.
        h = [_leaky_relu(x_ref[k, rows, :]) for k in range(N_DATAPOINTS)]

        for li, (nin, nout) in enumerate(LAYER_DIMS):
            w_off, b_off = LAYER_OFFSETS[li]
            is_last = li == n_layers - 1
            nxt = []
            for j in range(nout):
                # out_j = sum_k h_k * W[k, j] + b[j]  (VPU scalar-broadcast FMAs)
                acc = h[0] * wb_ref[w_off + j]
                for k in range(1, nin):
                    acc = acc + h[k] * wb_ref[w_off + k * nout + j]
                acc = acc + wb_ref[b_off + j]
                nxt.append(acc if is_last else _leaky_relu(acc))
            h = nxt

        o_ref[rows, :] = h[0].astype(o_ref.dtype)
        return carry

    jax.lax.fori_loop(0, ts // STRIP, strip_body, 0)


def pack_params(params):
    """Flatten (W, b) pairs ((in, out) layout) into one (WB_PAD,) f32 slab."""
    parts = []
    for w, b in params:
        parts.append(jnp.asarray(w, jnp.float32).reshape(-1))
        parts.append(jnp.asarray(b, jnp.float32).reshape(-1))
    flat = jnp.concatenate(parts)
    return jnp.pad(flat, (0, WB_PAD - flat.shape[0]))


def _round_up(x, m):
    return -(-x // m) * m


@functools.partial(jax.jit, static_argnames=("lanes", "sublane_tile"))
def _lsd_forward_jit(x, params, lanes, sublane_tile):
    B, F = x.shape
    assert F == N_DATAPOINTS
    assert lanes % 128 == 0 and sublane_tile % STRIP == 0

    # Fold the batch onto (sublane, lane).  Pick the sublane tile `ts` so that
    # there are >= 2 grid steps whenever there is enough work: the "parallel"
    # axis then shards across both TensorCores on v7x, and on single-TC chips
    # it only costs one extra ~0.35us pipeline step.
    s_needed = _round_up(max(pl.cdiv(B, lanes), 1), STRIP)
    ts_target = _round_up(pl.cdiv(s_needed, 2), STRIP)
    ts = max(STRIP, min(sublane_tile, ts_target))
    S = _round_up(s_needed, ts)
    Bp = S * lanes
    grid = (S // ts,)

    wb = pack_params(params)                       # (WB_PAD,) f32 -> SMEM

    # Layout plumbing fuses into a single HBM pass under this jit; the kernel
    # then sees fully lane-dense tiles and stores unmasked lane-dense vst.
    xt = jnp.transpose(x).astype(jnp.float32)      # (F, B): batch -> lanes
    xt = jnp.pad(xt, ((0, 0), (0, Bp - B)))        # (F, Bp) tail padding
    xt = xt.reshape(F, S, lanes)                   # (F, S, lanes)

    out2d = pl.pallas_call(
        lsd_kernel,
        out_shape=jax.ShapeDtypeStruct((S, lanes), jnp.float32),
        grid_spec=pltpu.PrefetchScalarGridSpec(
            num_scalar_prefetch=0,
            grid=grid,
            in_specs=[
                # Packed weights/biases: whole 1-D array, resident in SMEM.
                pl.BlockSpec(memory_space=pltpu.MemorySpace.SMEM),
                # Input tile: dense (F, ts, lanes) block (default Buffered(2)).
                pl.BlockSpec((F, ts, lanes), lambda i: (0, i, 0)),
            ],
            out_specs=pl.BlockSpec((ts, lanes), lambda i: (i, 0)),
        ),
        compiler_params=pltpu.CompilerParams(
            dimension_semantics=("parallel",)),
    )(wb, xt)

    return out2d.reshape(Bp)[:B].reshape(B, 1)


def lsd_forward(x, params, *, lanes=512, sublane_tile=256):
    """x: (B, N_DATAPOINTS) float32. Returns (B, 1) float32."""
    return _lsd_forward_jit(x, params, lanes=lanes, sublane_tile=sublane_tile)


def init_params(key):
    """Deterministic init mimicking PyTorch nn.Linear default (uniform(-k, k),
    k = 1/sqrt(in_features)). Weights stored as (in, out)."""
    params = []
    for (fan_in, fan_out) in LAYER_DIMS:
        key, kw, kb = jax.random.split(key, 3)
        bound = 1.0 / jnp.sqrt(jnp.float32(fan_in))
        w = jax.random.uniform(kw, (fan_in, fan_out), jnp.float32, -bound, bound)
        b = jax.random.uniform(kb, (1, fan_out), jnp.float32, -bound, bound)
        params.append((w, b))
    return params


def lsd_reference(x, params):
    """Pure-JAX reference of the PyTorch forward."""
    h = _leaky_relu(x)
    for i, (w, b) in enumerate(params):
        h = h @ w + b
        if i < len(params) - 1:
            h = _leaky_relu(h)
    return h


if __name__ == "__main__":
    key = jax.random.PRNGKey(0)
    key, kx1, kx2, kx3 = jax.random.split(key, 4)
    params = init_params(key)

    # Small batch: single grid step, single strip, heavy tail padding.
    x1 = jax.random.normal(kx1, (16, N_DATAPOINTS), jnp.float32)
    out1 = jax.block_until_ready(lsd_forward(x1, params))
    ref1 = lsd_reference(x1, params)
    assert out1.shape == (16, 1), out1.shape
    assert jnp.allclose(out1, ref1, atol=1e-5, rtol=1e-5)

    # Larger batch with small explicit tiles: 5-step grid, 1 strip per tile,
    # tail padding exercised.
    x2 = jax.random.normal(kx2, (5000, N_DATAPOINTS), jnp.float32)
    out2 = jax.block_until_ready(
        lsd_forward(x2, params, lanes=128, sublane_tile=8))
    ref2 = lsd_reference(x2, params)
    assert out2.shape == (5000, 1), out2.shape
    assert jnp.allclose(out2, ref2, atol=1e-5, rtol=1e-5)

    # Default tiles on a mid-size batch: >=2 parallel grid steps and a
    # multi-iteration inner strip loop.
    x3 = jax.random.normal(kx3, (12288, N_DATAPOINTS), jnp.float32)
    out3 = jax.block_until_ready(lsd_forward(x3, params))
    ref3 = lsd_reference(x3, params)
    assert out3.shape == (12288, 1), out3.shape
    assert jnp.allclose(out3, ref3, atol=1e-5, rtol=1e-5)

    print("KERNEL_OK")
</pallas_src>

<mosaic_0001>
module attributes {stable_mosaic.version = 11 : i64} {
  func.func @lsd_kernel(%arg0: i32, %arg1: memref<64xf32, #tpu.memory_space<smem>>, %arg2: memref<2x8x512xf32, #tpu.memory_space<vmem>>, %arg3: memref<8x512xf32, #tpu.memory_space<vmem>>) attributes {dimension_semantics = [#tpu.dimension_semantics<parallel>], iteration_bounds = array<i64: 1>, scalar_prefetch = 0 : i64, scratch_operands = 0 : i64, tpu.core_type = #tpu.core_type<tc>, window_params = [{transform_indices = @transform_0, window_bounds = array<i64: 64>}, {transform_indices = @transform_1, window_bounds = array<i64: 2, 8, 512>}, {transform_indices = @transform_2, window_bounds = array<i64: 8, 512>}]} {
    %c0_i32 = arith.constant 0 : i32
    %c8_i32 = arith.constant 8 : i32
    %0 = arith.muli %c0_i32, %c8_i32 : i32
    %1 = tpu.assume_multiple %0, 8 : i32
    %c0 = arith.constant 0 : index
    %2 = arith.index_cast %1 : i32 to index
    %c0_0 = arith.constant 0 : index
    %3 = vector.load %arg2[%c0, %2, %c0_0] : memref<2x8x512xf32, #tpu.memory_space<vmem>>, vector<1x8x512xf32>
    %4 = vector.shape_cast %3 : vector<1x8x512xf32> to vector<8x512xf32>
    %cst = arith.constant 0.00999999977 : f32
    %5 = vector.broadcast %cst : f32 to vector<8x512xf32>
    %6 = arith.mulf %5, %4 : vector<8x512xf32>
    %7 = arith.maximumf %4, %6 : vector<8x512xf32>
    %c1 = arith.constant 1 : index
    %8 = arith.index_cast %1 : i32 to index
    %c0_1 = arith.constant 0 : index
    %9 = vector.load %arg2[%c1, %8, %c0_1] : memref<2x8x512xf32, #tpu.memory_space<vmem>>, vector<1x8x512xf32>
    %10 = vector.shape_cast %9 : vector<1x8x512xf32> to vector<8x512xf32>
    %cst_2 = arith.constant 0.00999999977 : f32
    %11 = vector.broadcast %cst_2 : f32 to vector<8x512xf32>
    %12 = arith.mulf %11, %10 : vector<8x512xf32>
    %13 = arith.maximumf %10, %12 : vector<8x512xf32>
    %c0_3 = arith.constant 0 : index
    %14 = memref.load %arg1[%c0_3] : memref<64xf32, #tpu.memory_space<smem>>
    %15 = vector.broadcast %14 : f32 to vector<8x512xf32>
    %16 = arith.mulf %7, %15 : vector<8x512xf32>
    %c4 = arith.constant 4 : index
    %17 = memref.load %arg1[%c4] : memref<64xf32, #tpu.memory_space<smem>>
    %18 = vector.broadcast %17 : f32 to vector<8x512xf32>
    %19 = arith.mulf %13, %18 : vector<8x512xf32>
    %20 = arith.addf %16, %19 : vector<8x512xf32>
    %c8 = arith.constant 8 : index
    %21 = memref.load %arg1[%c8] : memref<64xf32, #tpu.memory_space<smem>>
    %22 = vector.broadcast %21 : f32 to vector<8x512xf32>
    %23 = arith.addf %20, %22 : vector<8x512xf32>
    %cst_4 = arith.constant 0.00999999977 : f32
    %24 = vector.broadcast %cst_4 : f32 to vector<8x512xf32>
    %25 = arith.mulf %24, %23 : vector<8x512xf32>
    %26 = arith.maximumf %23, %25 : vector<8x512xf32>
    %c1_5 = arith.constant 1 : index
    %27 = memref.load %arg1[%c1_5] : memref<64xf32, #tpu.memory_space<smem>>
    %28 = vector.broadcast %27 : f32 to vector<8x512xf32>
    %29 = arith.mulf %7, %28 : vector<8x512xf32>
    %c5 = arith.constant 5 : index
    %30 = memref.load %arg1[%c5] : memref<64xf32, #tpu.memory_space<smem>>
    %31 = vector.broadcast %30 : f32 to vector<8x512xf32>
    %32 = arith.mulf %13, %31 : vector<8x512xf32>
    %33 = arith.addf %29, %32 : vector<8x512xf32>
    %c9 = arith.constant 9 : index
    %34 = memref.load %arg1[%c9] : memref<64xf32, #tpu.memory_space<smem>>
    %35 = vector.broadcast %34 : f32 to vector<8x512xf32>
    %36 = arith.addf %33, %35 : vector<8x512xf32>
    %cst_6 = arith.constant 0.00999999977 : f32
    %37 = vector.broadcast %cst_6 : f32 to vector<8x512xf32>
    %38 = arith.mulf %37, %36 : vector<8x512xf32>
    %39 = arith.maximumf %36, %38 : vector<8x512xf32>
    %c2 = arith.constant 2 : index
    %40 = memref.load %arg1[%c2] : memref<64xf32, #tpu.memory_space<smem>>
    %41 = vector.broadcast %40 : f32 to vector<8x512xf32>
    %42 = arith.mulf %7, %41 : vector<8x512xf32>
    %c6 = arith.constant 6 : index
    %43 = memref.load %arg1[%c6] : memref<64xf32, #tpu.memory_space<smem>>
    %44 = vector.broadcast %43 : f32 to vector<8x512xf32>
    %45 = arith.mulf %13, %44 : vector<8x512xf32>
    %46 = arith.addf %42, %45 : vector<8x512xf32>
    %c10 = arith.constant 10 : index
    %47 = memref.load %arg1[%c10] : memref<64xf32, #tpu.memory_space<smem>>
    %48 = vector.broadcast %47 : f32 to vector<8x512xf32>
    %49 = arith.addf %46, %48 : vector<8x512xf32>
    %cst_7 = arith.constant 0.00999999977 : f32
    %50 = vector.broadcast %cst_7 : f32 to vector<8x512xf32>
    %51 = arith.mulf %50, %49 : vector<8x512xf32>
    %52 = arith.maximumf %49, %51 : vector<8x512xf32>
    %c3 = arith.constant 3 : index
    %53 = memref.load %arg1[%c3] : memref<64xf32, #tpu.memory_space<smem>>
    %54 = vector.broadcast %53 : f32 to vector<8x512xf32>
    %55 = arith.mulf %7, %54 : vector<8x512xf32>
    %c7 = arith.constant 7 : index
    %56 = memref.load %arg1[%c7] : memref<64xf32, #tpu.memory_space<smem>>
    %57 = vector.broadcast %56 : f32 to vector<8x512xf32>
    %58 = arith.mulf %13, %57 : vector<8x512xf32>
    %59 = arith.addf %55, %58 : vector<8x512xf32>
    %c11 = arith.constant 11 : index
    %60 = memref.load %arg1[%c11] : memref<64xf32, #tpu.memory_space<smem>>
    %61 = vector.broadcast %60 : f32 to vector<8x512xf32>
    %62 = arith.addf %59, %61 : vector<8x512xf32>
    %cst_8 = arith.constant 0.00999999977 : f32
    %63 = vector.broadcast %cst_8 : f32 to vector<8x512xf32>
    %64 = arith.mulf %63, %62 : vector<8x512xf32>
    %65 = arith.maximumf %62, %64 : vector<8x512xf32>
    %c12 = arith.constant 12 : index
    %66 = memref.load %arg1[%c12] : memref<64xf32, #tpu.memory_space<smem>>
    %67 = vector.broadcast %66 : f32 to vector<8x512xf32>
    %68 = arith.mulf %26, %67 : vector<8x512xf32>
    %c16 = arith.constant 16 : index
    %69 = memref.load %arg1[%c16] : memref<64xf32, #tpu.memory_space<smem>>
    %70 = vector.broadcast %69 : f32 to vector<8x512xf32>
    %71 = arith.mulf %39, %70 : vector<8x512xf32>
    %72 = arith.addf %68, %71 : vector<8x512xf32>
    %c20 = arith.constant 20 : index
    %73 = memref.load %arg1[%c20] : memref<64xf32, #tpu.memory_space<smem>>
    %74 = vector.broadcast %73 : f32 to vector<8x512xf32>
    %75 = arith.mulf %52, %74 : vector<8x512xf32>
    %76 = arith.addf %72, %75 : vector<8x512xf32>
    %c24 = arith.constant 24 : index
    %77 = memref.load %arg1[%c24] : memref<64xf32, #tpu.memory_space<smem>>
    %78 = vector.broadcast %77 : f32 to vector<8x512xf32>
    %79 = arith.mulf %65, %78 : vector<8x512xf32>
    %80 = arith.addf %76, %79 : vector<8x512xf32>
    %c28 = arith.constant 28 : index
    %81 = memref.load %arg1[%c28] : memref<64xf32, #tpu.memory_space<smem>>
    %82 = vector.broadcast %81 : f32 to vector<8x512xf32>
    %83 = arith.addf %80, %82 : vector<8x512xf32>
    %cst_9 = arith.constant 0.00999999977 : f32
    %84 = vector.broadcast %cst_9 : f32 to vector<8x512xf32>
    %85 = arith.mulf %84, %83 : vector<8x512xf32>
    %86 = arith.maximumf %83, %85 : vector<8x512xf32>
    %c13 = arith.constant 13 : index
    %87 = memref.load %arg1[%c13] : memref<64xf32, #tpu.memory_space<smem>>
    %88 = vector.broadcast %87 : f32 to vector<8x512xf32>
    %89 = arith.mulf %26, %88 : vector<8x512xf32>
    %c17 = arith.constant 17 : index
    %90 = memref.load %arg1[%c17] : memref<64xf32, #tpu.memory_space<smem>>
    %91 = vector.broadcast %90 : f32 to vector<8x512xf32>
    %92 = arith.mulf %39, %91 : vector<8x512xf32>
    %93 = arith.addf %89, %92 : vector<8x512xf32>
    %c21 = arith.constant 21 : index
    %94 = memref.load %arg1[%c21] : memref<64xf32, #tpu.memory_space<smem>>
    %95 = vector.broadcast %94 : f32 to vector<8x512xf32>
    %96 = arith.mulf %52, %95 : vector<8x512xf32>
    %97 = arith.addf %93, %96 : vector<8x512xf32>
    %c25 = arith.constant 25 : index
    %98 = memref.load %arg1[%c25] : memref<64xf32, #tpu.memory_space<smem>>
    %99 = vector.broadcast %98 : f32 to vector<8x512xf32>
    %100 = arith.mulf %65, %99 : vector<8x512xf32>
    %101 = arith.addf %97, %100 : vector<8x512xf32>
    %c29 = arith.constant 29 : index
    %102 = memref.load %arg1[%c29] : memref<64xf32, #tpu.memory_space<smem>>
    %103 = vector.broadcast %102 : f32 to vector<8x512xf32>
    %104 = arith.addf %101, %103 : vector<8x512xf32>
    %cst_10 = arith.constant 0.00999999977 : f32
    %105 = vector.broadcast %cst_10 : f32 to vector<8x512xf32>
    %106 = arith.mulf %105, %104 : vector<8x512xf32>
    %107 = arith.maximumf %104, %106 : vector<8x512xf32>
    %c14 = arith.constant 14 : index
    %108 = memref.load %arg1[%c14] : memref<64xf32, #tpu.memory_space<smem>>
    %109 = vector.broadcast %108 : f32 to vector<8x512xf32>
    %110 = arith.mulf %26, %109 : vector<8x512xf32>
    %c18 = arith.constant 18 : index
    %111 = memref.load %arg1[%c18] : memref<64xf32, #tpu.memory_space<smem>>
    %112 = vector.broadcast %111 : f32 to vector<8x512xf32>
    %113 = arith.mulf %39, %112 : vector<8x512xf32>
    %114 = arith.addf %110, %113 : vector<8x512xf32>
    %c22 = arith.constant 22 : index
    %115 = memref.load %arg1[%c22] : memref<64xf32, #tpu.memory_space<smem>>
    %116 = vector.broadcast %115 : f32 to vector<8x512xf32>
    %117 = arith.mulf %52, %116 : vector<8x512xf32>
    %118 = arith.addf %114, %117 : vector<8x512xf32>
    %c26 = arith.constant 26 : index
    %119 = memref.load %arg1[%c26] : memref<64xf32, #tpu.memory_space<smem>>
    %120 = vector.broadcast %119 : f32 to vector<8x512xf32>
    %121 = arith.mulf %65, %120 : vector<8x512xf32>
    %122 = arith.addf %118, %121 : vector<8x512xf32>
    %c30 = arith.constant 30 : index
    %123 = memref.load %arg1[%c30] : memref<64xf32, #tpu.memory_space<smem>>
    %124 = vector.broadcast %123 : f32 to vector<8x512xf32>
    %125 = arith.addf %122, %124 : vector<8x512xf32>
    %cst_11 = arith.constant 0.00999999977 : f32
    %126 = vector.broadcast %cst_11 : f32 to vector<8x512xf32>
    %127 = arith.mulf %126, %125 : vector<8x512xf32>
    %128 = arith.maximumf %125, %127 : vector<8x512xf32>
    %c15 = arith.constant 15 : index
    %129 = memref.load %arg1[%c15] : memref<64xf32, #tpu.memory_space<smem>>
    %130 = vector.broadcast %129 : f32 to vector<8x512xf32>
    %131 = arith.mulf %26, %130 : vector<8x512xf32>
    %c19 = arith.constant 19 : index
    %132 = memref.load %arg1[%c19] : memref<64xf32, #tpu.memory_space<smem>>
    %133 = vector.broadcast %132 : f32 to vector<8x512xf32>
    %134 = arith.mulf %39, %133 : vector<8x512xf32>
    %135 = arith.addf %131, %134 : vector<8x512xf32>
    %c23 = arith.constant 23 : index
    %136 = memref.load %arg1[%c23] : memref<64xf32, #tpu.memory_space<smem>>
    %137 = vector.broadcast %136 : f32 to vector<8x512xf32>
    %138 = arith.mulf %52, %137 : vector<8x512xf32>
    %139 = arith.addf %135, %138 : vector<8x512xf32>
    %c27 = arith.constant 27 : index
    %140 = memref.load %arg1[%c27] : memref<64xf32, #tpu.memory_space<smem>>
    %141 = vector.broadcast %140 : f32 to vector<8x512xf32>
    %142 = arith.mulf %65, %141 : vector<8x512xf32>
    %143 = arith.addf %139, %142 : vector<8x512xf32>
    %c31 = arith.constant 31 : index
    %144 = memref.load %arg1[%c31] : memref<64xf32, #tpu.memory_space<smem>>
    %145 = vector.broadcast %144 : f32 to vector<8x512xf32>
    %146 = arith.addf %143, %145 : vector<8x512xf32>
    %cst_12 = arith.constant 0.00999999977 : f32
    %147 = vector.broadcast %cst_12 : f32 to vector<8x512xf32>
    %148 = arith.mulf %147, %146 : vector<8x512xf32>
    %149 = arith.maximumf %146, %148 : vector<8x512xf32>
    %c32 = arith.constant 32 : index
    %150 = memref.load %arg1[%c32] : memref<64xf32, #tpu.memory_space<smem>>
    %151 = vector.broadcast %150 : f32 to vector<8x512xf32>
    %152 = arith.mulf %86, %151 : vector<8x512xf32>
    %c36 = arith.constant 36 : index
    %153 = memref.load %arg1[%c36] : memref<64xf32, #tpu.memory_space<smem>>
    %154 = vector.broadcast %153 : f32 to vector<8x512xf32>
    %155 = arith.mulf %107, %154 : vector<8x512xf32>
    %156 = arith.addf %152, %155 : vector<8x512xf32>
    %c40 = arith.constant 40 : index
    %157 = memref.load %arg1[%c40] : memref<64xf32, #tpu.memory_space<smem>>
    %158 = vector.broadcast %157 : f32 to vector<8x512xf32>
    %159 = arith.mulf %128, %158 : vector<8x512xf32>
    %160 = arith.addf %156, %159 : vector<8x512xf32>
    %c44 = arith.constant 44 : index
    %161 = memref.load %arg1[%c44] : memref<64xf32, #tpu.memory_space<smem>>
    %162 = vector.broadcast %161 : f32 to vector<8x512xf32>
    %163 = arith.mulf %149, %162 : vector<8x512xf32>
    %164 = arith.addf %160, %163 : vector<8x512xf32>
    %c48 = arith.constant 48 : index
    %165 = memref.load %arg1[%c48] : memref<64xf32, #tpu.memory_space<smem>>
    %166 = vector.broadcast %165 : f32 to vector<8x512xf32>
    %167 = arith.addf %164, %166 : vector<8x512xf32>
    %cst_13 = arith.constant 0.00999999977 : f32
    %168 = vector.broadcast %cst_13 : f32 to vector<8x512xf32>
    %169 = arith.mulf %168, %167 : vector<8x512xf32>
    %170 = arith.maximumf %167, %169 : vector<8x512xf32>
    %c33 = arith.constant 33 : index
    %171 = memref.load %arg1[%c33] : memref<64xf32, #tpu.memory_space<smem>>
    %172 = vector.broadcast %171 : f32 to vector<8x512xf32>
    %173 = arith.mulf %86, %172 : vector<8x512xf32>
    %c37 = arith.constant 37 : index
    %174 = memref.load %arg1[%c37] : memref<64xf32, #tpu.memory_space<smem>>
    %175 = vector.broadcast %174 : f32 to vector<8x512xf32>
    %176 = arith.mulf %107, %175 : vector<8x512xf32>
    %177 = arith.addf %173, %176 : vector<8x512xf32>
    %c41 = arith.constant 41 : index
    %178 = memref.load %arg1[%c41] : memref<64xf32, #tpu.memory_space<smem>>
    %179 = vector.broadcast %178 : f32 to vector<8x512xf32>
    %180 = arith.mulf %128, %179 : vector<8x512xf32>
    %181 = arith.addf %177, %180 : vector<8x512xf32>
    %c45 = arith.constant 45 : index
    %182 = memref.load %arg1[%c45] : memref<64xf32, #tpu.memory_space<smem>>
    %183 = vector.broadcast %182 : f32 to vector<8x512xf32>
    %184 = arith.mulf %149, %183 : vector<8x512xf32>
    %185 = arith.addf %181, %184 : vector<8x512xf32>
    %c49 = arith.constant 49 : index
    %186 = memref.load %arg1[%c49] : memref<64xf32, #tpu.memory_space<smem>>
    %187 = vector.broadcast %186 : f32 to vector<8x512xf32>
    %188 = arith.addf %185, %187 : vector<8x512xf32>
    %cst_14 = arith.constant 0.00999999977 : f32
    %189 = vector.broadcast %cst_14 : f32 to vector<8x512xf32>
    %190 = arith.mulf %189, %188 : vector<8x512xf32>
    %191 = arith.maximumf %188, %190 : vector<8x512xf32>
    %c34 = arith.constant 34 : index
    %192 = memref.load %arg1[%c34] : memref<64xf32, #tpu.memory_space<smem>>
    %193 = vector.broadcast %192 : f32 to vector<8x512xf32>
    %194 = arith.mulf %86, %193 : vector<8x512xf32>
    %c38 = arith.constant 38 : index
    %195 = memref.load %arg1[%c38] : memref<64xf32, #tpu.memory_space<smem>>
    %196 = vector.broadcast %195 : f32 to vector<8x512xf32>
    %197 = arith.mulf %107, %196 : vector<8x512xf32>
    %198 = arith.addf %194, %197 : vector<8x512xf32>
    %c42 = arith.constant 42 : index
    %199 = memref.load %arg1[%c42] : memref<64xf32, #tpu.memory_space<smem>>
    %200 = vector.broadcast %199 : f32 to vector<8x512xf32>
    %201 = arith.mulf %128, %200 : vector<8x512xf32>
    %202 = arith.addf %198, %201 : vector<8x512xf32>
    %c46 = arith.constant 46 : index
    %203 = memref.load %arg1[%c46] : memref<64xf32, #tpu.memory_space<smem>>
    %204 = vector.broadcast %203 : f32 to vector<8x512xf32>
    %205 = arith.mulf %149, %204 : vector<8x512xf32>
    %206 = arith.addf %202, %205 : vector<8x512xf32>
    %c50 = arith.constant 50 : index
    %207 = memref.load %arg1[%c50] : memref<64xf32, #tpu.memory_space<smem>>
    %208 = vector.broadcast %207 : f32 to vector<8x512xf32>
    %209 = arith.addf %206, %208 : vector<8x512xf32>
    %cst_15 = arith.constant 0.00999999977 : f32
    %210 = vector.broadcast %cst_15 : f32 to vector<8x512xf32>
    %211 = arith.mulf %210, %209 : vector<8x512xf32>
    %212 = arith.maximumf %209, %211 : vector<8x512xf32>
    %c35 = arith.constant 35 : index
    %213 = memref.load %arg1[%c35] : memref<64xf32, #tpu.memory_space<smem>>
    %214 = vector.broadcast %213 : f32 to vector<8x512xf32>
    %215 = arith.mulf %86, %214 : vector<8x512xf32>
    %c39 = arith.constant 39 : index
    %216 = memref.load %arg1[%c39] : memref<64xf32, #tpu.memory_space<smem>>
    %217 = vector.broadcast %216 : f32 to vector<8x512xf32>
    %218 = arith.mulf %107, %217 : vector<8x512xf32>
    %219 = arith.addf %215, %218 : vector<8x512xf32>
    %c43 = arith.constant 43 : index
    %220 = memref.load %arg1[%c43] : memref<64xf32, #tpu.memory_space<smem>>
    %221 = vector.broadcast %220 : f32 to vector<8x512xf32>
    %222 = arith.mulf %128, %221 : vector<8x512xf32>
    %223 = arith.addf %219, %222 : vector<8x512xf32>
    %c47 = arith.constant 47 : index
    %224 = memref.load %arg1[%c47] : memref<64xf32, #tpu.memory_space<smem>>
    %225 = vector.broadcast %224 : f32 to vector<8x512xf32>
    %226 = arith.mulf %149, %225 : vector<8x512xf32>
    %227 = arith.addf %223, %226 : vector<8x512xf32>
    %c51 = arith.constant 51 : index
    %228 = memref.load %arg1[%c51] : memref<64xf32, #tpu.memory_space<smem>>
    %229 = vector.broadcast %228 : f32 to vector<8x512xf32>
    %230 = arith.addf %227, %229 : vector<8x512xf32>
    %cst_16 = arith.constant 0.00999999977 : f32
    %231 = vector.broadcast %cst_16 : f32 to vector<8x512xf32>
    %232 = arith.mulf %231, %230 : vector<8x512xf32>
    %233 = arith.maximumf %230, %232 : vector<8x512xf32>
    %c52 = arith.constant 52 : index
    %234 = memref.load %arg1[%c52] : memref<64xf32, #tpu.memory_space<smem>>
    %235 = vector.broadcast %234 : f32 to vector<8x512xf32>
    %236 = arith.mulf %170, %235 : vector<8x512xf32>
    %c53 = arith.constant 53 : index
    %237 = memref.load %arg1[%c53] : memref<64xf32, #tpu.memory_space<smem>>
    %238 = vector.broadcast %237 : f32 to vector<8x512xf32>
    %239 = arith.mulf %191, %238 : vector<8x512xf32>
    %240 = arith.addf %236, %239 : vector<8x512xf32>
    %c54 = arith.constant 54 : index
    %241 = memref.load %arg1[%c54] : memref<64xf32, #tpu.memory_space<smem>>
    %242 = vector.broadcast %241 : f32 to vector<8x512xf32>
    %243 = arith.mulf %212, %242 : vector<8x512xf32>
    %244 = arith.addf %240, %243 : vector<8x512xf32>
    %c55 = arith.constant 55 : index
    %245 = memref.load %arg1[%c55] : memref<64xf32, #tpu.memory_space<smem>>
    %246 = vector.broadcast %245 : f32 to vector<8x512xf32>
    %247 = arith.mulf %233, %246 : vector<8x512xf32>
    %248 = arith.addf %244, %247 : vector<8x512xf32>
    %c56 = arith.constant 56 : index
    %249 = memref.load %arg1[%c56] : memref<64xf32, #tpu.memory_space<smem>>
    %250 = vector.broadcast %249 : f32 to vector<8x512xf32>
    %251 = arith.addf %248, %250 : vector<8x512xf32>
    %252 = arith.index_cast %1 : i32 to index
    %c0_17 = arith.constant 0 : index
    %253 = vector.load %arg3[%252, %c0_17] : memref<8x512xf32, #tpu.memory_space<vmem>>, vector<8x512xf32>
    tpu.vector_store %arg3[%252, %c0_17], %251 {strides = array<i32>} : memref<8x512xf32, #tpu.memory_space<vmem>>, vector<8x512xf32>,
    %c1_i32 = arith.constant 1 : i32
    return
  }
  func.func @transform_0(%arg0: i32) -> i32 {
    %c0_i32 = arith.constant 0 : i32
    %c0_i32_0 = arith.constant 0 : i32
    return %c0_i32 : i32
  }
  func.func @transform_1(%arg0: i32) -> (i32, i32, i32) {
    %c0_i32 = arith.constant 0 : i32
    %c0_i32_0 = arith.constant 0 : i32
    %c0_i32_1 = arith.constant 0 : i32
    return %c0_i32, %arg0, %c0_i32_0 : i32, i32, i32
  }
  func.func @transform_2(%arg0: i32) -> (i32, i32) {
    %c0_i32 = arith.constant 0 : i32
    %c0_i32_0 = arith.constant 0 : i32
    return %arg0, %c0_i32 : i32, i32
  }
}

</mosaic_0001>

<llo_original>
// kernel: _lsd_forward_jit.1
$region0: #{_lsd_forward_jit.1}
  #allocation0 [shape = 'u32[]', space=smem, size = 0x4, offset = 0x4, fixed_abs, tag = 'smem constant byte address 0x4 - core index']
  #allocation1 [shape = 'u32[144,128]{1,0:T(1,128)}', space=vmem, size = 0x12000, scoped, tag = 'internal scratch']
  %s0 = inlined_call_operand.vmem [shape: f32[64], index: 0, kind: input, shape index: {}]
  %s1 = inlined_call_operand.vmem [shape: f32[2,8,512], index: 1, kind: input, shape index: {}]
  %s2 = inlined_call_operand.vmem [shape: f32[8,512], index: 2, kind: output, shape index: {}]
  %s3 = sld [smem:[#allocation0]]
  $region22: #{_lsd_forward_jit.1} parent=0
    _
  %s5 = ssub.s32 1, %s3
  %s6 = scalar_select 0, %s5, %s3
  $region1: #{_lsd_forward_jit.1} parent=0
    #allocation2 [shape = 'u8[512]{0}', space=smem, size = 0x200, scoped, tag = 'input window, operand 0, single buffered']
    #allocation3 [shape = 's32[1]{0}', space=sflag, size = 0x4, scoped, tag = 'scoped memory for _lsd_forward_jit.1']
    %7 = vsyncpa [#allocation3], 0
    // Predicated region
    $region2: #{_lsd_forward_jit.1} parent=1 // pred_check
      _
    $region3: #{_lsd_forward_jit.1} parent=1 // pred_check_branch
      %9 = sbr.rel (0) target = $region5
    $region4: #{_lsd_forward_jit.1} parent=1 // pred_region
      %s11 = ssub.s32 16, 16
      %12 = vsyncadd [#allocation3], %s11
      %s14 = sshll.u32 %s0, 4
      %s15 = int_to_ptr.vmem [resolvable:$true] %s14
      %17 = dma.vmem_to_smem %s15, 16, [#allocation2], [#allocation3]
    $region5: #{_lsd_forward_jit.1} parent=1 // pred_fallthru
      _
    // Predicated region
    $region6: #{_lsd_forward_jit.1} parent=1 // pred_check
      _
    $region7: #{_lsd_forward_jit.1} parent=1 // pred_check_branch
      %19 = sbr.rel (0) target = $region9
    $region8: #{_lsd_forward_jit.1} parent=1 // pred_region
      _
    $region9: #{_lsd_forward_jit.1} parent=1 // pred_fallthru
      _
    // Predicated region
    $region10: #{_lsd_forward_jit.1} parent=1 // pred_check
      _
    $region11: #{_lsd_forward_jit.1} parent=1 // pred_check_branch
      %21 = sbr.rel (0) target = $region13
    $region12: #{_lsd_forward_jit.1} parent=1 // pred_region
      %22 = dma.done [#allocation3], 16
    $region13: #{_lsd_forward_jit.1} parent=1 // pred_fallthru
      _
    %23 = sfence
    %s24 = smul.u32 0, 4
    %s25 = smul.addr %s24, 8
    %s26 = scalar_lea.vmem %s1, %s25
    %v27 = vld [vmem:[%s26] sm:$0xff]
    %v28 = vld [vmem:[%s26 + $0x8] sm:$0xff]
    %v29 = vld [vmem:[%s26 + $0x10] sm:$0xff]
    %v30 = vld [vmem:[%s26 + $0x18] sm:$0xff]
    %v31 = vmul.f32 %v27, 0.01
    %v32 = vmul.f32 %v28, 0.01
    %v33 = vmul.f32 %v29, 0.01
    %v34 = vmul.f32 %v30, 0.01
    %v35 = vmax.f32 %v27, %v31
    %v36 = vmax.f32 %v28, %v32
    %v37 = vmax.f32 %v29, %v33
    %v38 = vmax.f32 %v30, %v34
    %s39 = sadd.s32 %s24, 4
    %s40 = smul.addr %s39, 8
    %s41 = scalar_lea.vmem %s1, %s40
    %v42 = vld [vmem:[%s41] sm:$0xff]
    %v43 = vld [vmem:[%s41 + $0x8] sm:$0xff]
    %v44 = vld [vmem:[%s41 + $0x10] sm:$0xff]
    %v45 = vld [vmem:[%s41 + $0x18] sm:$0xff]
    %v46 = vmul.f32 %v42, 0.01
    %v47 = vmul.f32 %v43, 0.01
    %v48 = vmul.f32 %v44, 0.01
    %v49 = vmul.f32 %v45, 0.01
    %v50 = vmax.f32 %v42, %v46
    %v51 = vmax.f32 %v43, %v47
    %v52 = vmax.f32 %v44, %v48
    %v53 = vmax.f32 %v45, %v49
    %s54 = sld [smem:[#allocation2]]
    %v55 = vstv %s54
    %v56 = vmul.f32 %v35, %v55
    %v57 = vmul.f32 %v36, %v55
    %v58 = vmul.f32 %v37, %v55
    %v59 = vmul.f32 %v38, %v55
    %s60 = sld [smem:[#allocation2 + $0x4]]
    %v61 = vstv %s60
    %v62 = vmul.f32 %v50, %v61
    %v63 = vmul.f32 %v51, %v61
    %v64 = vmul.f32 %v52, %v61
    %v65 = vmul.f32 %v53, %v61
    %v66 = vadd.f32 %v56, %v62
    %v67 = vadd.f32 %v57, %v63
    %v68 = vadd.f32 %v58, %v64
    %v69 = vadd.f32 %v59, %v65
    %s70 = sld [smem:[#allocation2 + $0x8]]
    %v71 = vstv %s70
    %v72 = vadd.f32 %v66, %v71
    %v73 = vadd.f32 %v67, %v71
    %v74 = vadd.f32 %v68, %v71
    %v75 = vadd.f32 %v69, %v71
    %v76 = vmul.f32 %v72, 0.01
    %v77 = vmul.f32 %v73, 0.01
    %v78 = vmul.f32 %v74, 0.01
    %v79 = vmul.f32 %v75, 0.01
    %v80 = vmax.f32 %v72, %v76
    %v81 = vmax.f32 %v73, %v77
    %v82 = vmax.f32 %v74, %v78
    %v83 = vmax.f32 %v75, %v79
    %s84 = sld [smem:[#allocation2 + $0x1]]
    %v85 = vstv %s84
    %v86 = vmul.f32 %v35, %v85
    %v87 = vmul.f32 %v36, %v85
    %v88 = vmul.f32 %v37, %v85
    %v89 = vmul.f32 %v38, %v85
    %s90 = sld [smem:[#allocation2 + $0x5]]
    %v91 = vstv %s90
    %v92 = vmul.f32 %v50, %v91
    %v93 = vmul.f32 %v51, %v91
    %v94 = vmul.f32 %v52, %v91
    %v95 = vmul.f32 %v53, %v91
    %v96 = vadd.f32 %v86, %v92
    %v97 = vadd.f32 %v87, %v93
    %v98 = vadd.f32 %v88, %v94
    %v99 = vadd.f32 %v89, %v95
    %s100 = sld [smem:[#allocation2 + $0x9]]
    %v101 = vstv %s100
    %v102 = vadd.f32 %v96, %v101
    %v103 = vadd.f32 %v97, %v101
    %v104 = vadd.f32 %v98, %v101
    %v105 = vadd.f32 %v99, %v101
    %v106 = vmul.f32 %v102, 0.01
    %v107 = vmul.f32 %v103, 0.01
    %v108 = vmul.f32 %v104, 0.01
    %v109 = vmul.f32 %v105, 0.01
    %v110 = vmax.f32 %v102, %v106
    %v111 = vmax.f32 %v103, %v107
    %v112 = vmax.f32 %v104, %v108
    %v113 = vmax.f32 %v105, %v109
    %s114 = sld [smem:[#allocation2 + $0x2]]
    %v115 = vstv %s114
    %v116 = vmul.f32 %v35, %v115
    %v117 = vmul.f32 %v36, %v115
    %v118 = vmul.f32 %v37, %v115
    %v119 = vmul.f32 %v38, %v115
    %s120 = sld [smem:[#allocation2 + $0x6]]
    %v121 = vstv %s120
    %v122 = vmul.f32 %v50, %v121
    %v123 = vmul.f32 %v51, %v121
    %v124 = vmul.f32 %v52, %v121
    %v125 = vmul.f32 %v53, %v121
    %v126 = vadd.f32 %v116, %v122
    %v127 = vadd.f32 %v117, %v123
    %v128 = vadd.f32 %v118, %v124
    %v129 = vadd.f32 %v119, %v125
    %s130 = sld [smem:[#allocation2 + $0xa]]
    %v131 = vstv %s130
    %v132 = vadd.f32 %v126, %v131
    %v133 = vadd.f32 %v127, %v131
    %v134 = vadd.f32 %v128, %v131
    %v135 = vadd.f32 %v129, %v131
    %v136 = vmul.f32 %v132, 0.01
    %v137 = vmul.f32 %v133, 0.01
    %v138 = vmul.f32 %v134, 0.01
    %v139 = vmul.f32 %v135, 0.01
    %v140 = vmax.f32 %v132, %v136
    %v141 = vmax.f32 %v133, %v137
    %v142 = vmax.f32 %v134, %v138
    %v143 = vmax.f32 %v135, %v139
    %s144 = sld [smem:[#allocation2 + $0x3]]
    %v145 = vstv %s144
    %v146 = vmul.f32 %v35, %v145
    %v147 = vmul.f32 %v36, %v145
    %v148 = vmul.f32 %v37, %v145
    %v149 = vmul.f32 %v38, %v145
    %s150 = sld [smem:[#allocation2 + $0x7]]
    %v151 = vstv %s150
    %v152 = vmul.f32 %v50, %v151
    %v153 = vmul.f32 %v51, %v151
    %v154 = vmul.f32 %v52, %v151
    %v155 = vmul.f32 %v53, %v151
    %v156 = vadd.f32 %v146, %v152
    %v157 = vadd.f32 %v147, %v153
    %v158 = vadd.f32 %v148, %v154
    %v159 = vadd.f32 %v149, %v155
    %s160 = sld [smem:[#allocation2 + $0xb]]
    %v161 = vstv %s160
    %v162 = vadd.f32 %v156, %v161
    %v163 = vadd.f32 %v157, %v161
    %v164 = vadd.f32 %v158, %v161
    %v165 = vadd.f32 %v159, %v161
    %v166 = vmul.f32 %v162, 0.01
    %v167 = vmul.f32 %v163, 0.01
    %v168 = vmul.f32 %v164, 0.01
    %v169 = vmul.f32 %v165, 0.01
    %v170 = vmax.f32 %v162, %v166
    %v171 = vmax.f32 %v163, %v167
    %v172 = vmax.f32 %v164, %v168
    %v173 = vmax.f32 %v165, %v169
    %s174 = sld [smem:[#allocation2 + $0xc]]
    %v175 = vstv %s174
    %v176 = vmul.f32 %v80, %v175
    %v177 = vmul.f32 %v81, %v175
    %v178 = vmul.f32 %v82, %v175
    %v179 = vmul.f32 %v83, %v175
    %s180 = sld [smem:[#allocation2 + $0x10]]
    %v181 = vstv %s180
    %v182 = vmul.f32 %v110, %v181
    %v183 = vmul.f32 %v111, %v181
    %v184 = vmul.f32 %v112, %v181
    %v185 = vmul.f32 %v113, %v181
    %v186 = vadd.f32 %v176, %v182
    %v187 = vadd.f32 %v177, %v183
    %v188 = vadd.f32 %v178, %v184
    %v189 = vadd.f32 %v179, %v185
    %s190 = sld [smem:[#allocation2 + $0x14]]
    %v191 = vstv %s190
    %v192 = vmul.f32 %v140, %v191
    %v193 = vmul.f32 %v141, %v191
    %v194 = vmul.f32 %v142, %v191
    %v195 = vmul.f32 %v143, %v191
    %v196 = vadd.f32 %v186, %v192
    %v197 = vadd.f32 %v187, %v193
    %v198 = vadd.f32 %v188, %v194
    %v199 = vadd.f32 %v189, %v195
    %s200 = sld [smem:[#allocation2 + $0x18]]
    %v201 = vstv %s200
    %v202 = vmul.f32 %v170, %v201
    %v203 = vmul.f32 %v171, %v201
    %v204 = vmul.f32 %v172, %v201
    %v205 = vmul.f32 %v173, %v201
    %v206 = vadd.f32 %v196, %v202
    %v207 = vadd.f32 %v197, %v203
    %v208 = vadd.f32 %v198, %v204
    %v209 = vadd.f32 %v199, %v205
    %s210 = sld [smem:[#allocation2 + $0x1c]]
    %v211 = vstv %s210
    %v212 = vadd.f32 %v206, %v211
    %v213 = vadd.f32 %v207, %v211
    %v214 = vadd.f32 %v208, %v211
    %v215 = vadd.f32 %v209, %v211
    %v216 = vmul.f32 %v212, 0.01
    %v217 = vmul.f32 %v213, 0.01
    %v218 = vmul.f32 %v214, 0.01
    %v219 = vmul.f32 %v215, 0.01
    %v220 = vmax.f32 %v212, %v216
    %v221 = vmax.f32 %v213, %v217
    %v222 = vmax.f32 %v214, %v218
    %v223 = vmax.f32 %v215, %v219
    %s224 = sld [smem:[#allocation2 + $0xd]]
    %v225 = vstv %s224
    %v226 = vmul.f32 %v80, %v225
    %v227 = vmul.f32 %v81, %v225
    %v228 = vmul.f32 %v82, %v225
    %v229 = vmul.f32 %v83, %v225
    %s230 = sld [smem:[#allocation2 + $0x11]]
    %v231 = vstv %s230
    %v232 = vmul.f32 %v110, %v231
    %v233 = vmul.f32 %v111, %v231
    %v234 = vmul.f32 %v112, %v231
    %v235 = vmul.f32 %v113, %v231
    %v236 = vadd.f32 %v226, %v232
    %v237 = vadd.f32 %v227, %v233
    %v238 = vadd.f32 %v228, %v234
    %v239 = vadd.f32 %v229, %v235
    %s240 = sld [smem:[#allocation2 + $0x15]]
    %v241 = vstv %s240
    %v242 = vmul.f32 %v140, %v241
    %v243 = vmul.f32 %v141, %v241
    %v244 = vmul.f32 %v142, %v241
    %v245 = vmul.f32 %v143, %v241
    %v246 = vadd.f32 %v236, %v242
    %v247 = vadd.f32 %v237, %v243
    %v248 = vadd.f32 %v238, %v244
    %v249 = vadd.f32 %v239, %v245
    %s250 = sld [smem:[#allocation2 + $0x19]]
    %v251 = vstv %s250
    %v252 = vmul.f32 %v170, %v251
    %v253 = vmul.f32 %v171, %v251
    %v254 = vmul.f32 %v172, %v251
    %v255 = vmul.f32 %v173, %v251
    %v256 = vadd.f32 %v246, %v252
    %v257 = vadd.f32 %v247, %v253
    %v258 = vadd.f32 %v248, %v254
    %v259 = vadd.f32 %v249, %v255
    %s260 = sld [smem:[#allocation2 + $0x1d]]
    %v261 = vstv %s260
    %v262 = vadd.f32 %v256, %v261
    %v263 = vadd.f32 %v257, %v261
    %v264 = vadd.f32 %v258, %v261
    %v265 = vadd.f32 %v259, %v261
    %v266 = vmul.f32 %v262, 0.01
    %v267 = vmul.f32 %v263, 0.01
    %v268 = vmul.f32 %v264, 0.01
    %v269 = vmul.f32 %v265, 0.01
    %v270 = vmax.f32 %v262, %v266
    %v271 = vmax.f32 %v263, %v267
    %v272 = vmax.f32 %v264, %v268
    %v273 = vmax.f32 %v265, %v269
    %s274 = sld [smem:[#allocation2 + $0xe]]
    %v275 = vstv %s274
    %v276 = vmul.f32 %v80, %v275
    %v277 = vmul.f32 %v81, %v275
    %v278 = vmul.f32 %v82, %v275
    %v279 = vmul.f32 %v83, %v275
    %s280 = sld [smem:[#allocation2 + $0x12]]
    %v281 = vstv %s280
    %v282 = vmul.f32 %v110, %v281
    %v283 = vmul.f32 %v111, %v281
    %v284 = vmul.f32 %v112, %v281
    %v285 = vmul.f32 %v113, %v281
    %v286 = vadd.f32 %v276, %v282
    %v287 = vadd.f32 %v277, %v283
    %v288 = vadd.f32 %v278, %v284
    %v289 = vadd.f32 %v279, %v285
    %s290 = sld [smem:[#allocation2 + $0x16]]
    %v291 = vstv %s290
    %v292 = vmul.f32 %v140, %v291
    %v293 = vmul.f32 %v141, %v291
    %v294 = vmul.f32 %v142, %v291
    %v295 = vmul.f32 %v143, %v291
    %v296 = vadd.f32 %v286, %v292
    %v297 = vadd.f32 %v287, %v293
    %v298 = vadd.f32 %v288, %v294
    %v299 = vadd.f32 %v289, %v295
    %s300 = sld [smem:[#allocation2 + $0x1a]]
    %v301 = vstv %s300
    %v302 = vmul.f32 %v170, %v301
    %v303 = vmul.f32 %v171, %v301
    %v304 = vmul.f32 %v172, %v301
    %v305 = vmul.f32 %v173, %v301
    %v306 = vadd.f32 %v296, %v302
    %v307 = vadd.f32 %v297, %v303
    %v308 = vadd.f32 %v298, %v304
    %v309 = vadd.f32 %v299, %v305
    %s310 = sld [smem:[#allocation2 + $0x1e]]
    %v311 = vstv %s310
    %v312 = vadd.f32 %v306, %v311
    %v313 = vadd.f32 %v307, %v311
    %v314 = vadd.f32 %v308, %v311
    %v315 = vadd.f32 %v309, %v311
    %v316 = vmul.f32 %v312, 0.01
    %v317 = vmul.f32 %v313, 0.01
    %v318 = vmul.f32 %v314, 0.01
    %v319 = vmul.f32 %v315, 0.01
    %v320 = vmax.f32 %v312, %v316
    %v321 = vmax.f32 %v313, %v317
    %v322 = vmax.f32 %v314, %v318
    %v323 = vmax.f32 %v315, %v319
    %s324 = sld [smem:[#allocation2 + $0xf]]
    %v325 = vstv %s324
    %v326 = vmul.f32 %v80, %v325
    %v327 = vmul.f32 %v81, %v325
    %v328 = vmul.f32 %v82, %v325
    %v329 = vmul.f32 %v83, %v325
    %s330 = sld [smem:[#allocation2 + $0x13]]
    %v331 = vstv %s330
    %v332 = vmul.f32 %v110, %v331
    %v333 = vmul.f32 %v111, %v331
    %v334 = vmul.f32 %v112, %v331
    %v335 = vmul.f32 %v113, %v331
    %v336 = vadd.f32 %v326, %v332
    %v337 = vadd.f32 %v327, %v333
    %v338 = vadd.f32 %v328, %v334
    %v339 = vadd.f32 %v329, %v335
    %s340 = sld [smem:[#allocation2 + $0x17]]
    %v341 = vstv %s340
    %v342 = vmul.f32 %v140, %v341
    %v343 = vmul.f32 %v141, %v341
    %v344 = vmul.f32 %v142, %v341
    %v345 = vmul.f32 %v143, %v341
    %v346 = vadd.f32 %v336, %v342
    %v347 = vadd.f32 %v337, %v343
    %v348 = vadd.f32 %v338, %v344
    %v349 = vadd.f32 %v339, %v345
    %s350 = sld [smem:[#allocation2 + $0x1b]]
    %v351 = vstv %s350
    %v352 = vmul.f32 %v170, %v351
    %v353 = vmul.f32 %v171, %v351
    %v354 = vmul.f32 %v172, %v351
    %v355 = vmul.f32 %v173, %v351
    %v356 = vadd.f32 %v346, %v352
    %v357 = vadd.f32 %v347, %v353
    %v358 = vadd.f32 %v348, %v354
    %v359 = vadd.f32 %v349, %v355
    %s360 = sld [smem:[#allocation2 + $0x1f]]
    %v361 = vstv %s360
    %v362 = vadd.f32 %v356, %v361
    %v363 = vadd.f32 %v357, %v361
    %v364 = vadd.f32 %v358, %v361
    %v365 = vadd.f32 %v359, %v361
    %v366 = vmul.f32 %v362, 0.01
    %v367 = vmul.f32 %v363, 0.01
    %v368 = vmul.f32 %v364, 0.01
    %v369 = vmul.f32 %v365, 0.01
    %v370 = vmax.f32 %v362, %v366
    %v371 = vmax.f32 %v363, %v367
    %v372 = vmax.f32 %v364, %v368
    %v373 = vmax.f32 %v365, %v369
    %s374 = sld [smem:[#allocation2 + $0x20]]
    %v375 = vstv %s374
    %v376 = vmul.f32 %v220, %v375
    %v377 = vmul.f32 %v221, %v375
    %v378 = vmul.f32 %v222, %v375
    %v379 = vmul.f32 %v223, %v375
    %s380 = sld [smem:[#allocation2 + $0x24]]
    %v381 = vstv %s380
    %v382 = vmul.f32 %v270, %v381
    %v383 = vmul.f32 %v271, %v381
    %v384 = vmul.f32 %v272, %v381
    %v385 = vmul.f32 %v273, %v381
    %v386 = vadd.f32 %v376, %v382
    %v387 = vadd.f32 %v377, %v383
    %v388 = vadd.f32 %v378, %v384
    %v389 = vadd.f32 %v379, %v385
    %s390 = sld [smem:[#allocation2 + $0x28]]
    %v391 = vstv %s390
    %v392 = vmul.f32 %v320, %v391
    %v393 = vmul.f32 %v321, %v391
    %v394 = vmul.f32 %v322, %v391
    %v395 = vmul.f32 %v323, %v391
    %v396 = vadd.f32 %v386, %v392
    %v397 = vadd.f32 %v387, %v393
    %v398 = vadd.f32 %v388, %v394
    %v399 = vadd.f32 %v389, %v395
    %s400 = sld [smem:[#allocation2 + $0x2c]]
    %v401 = vstv %s400
    %v402 = vmul.f32 %v370, %v401
    %v403 = vmul.f32 %v371, %v401
    %v404 = vmul.f32 %v372, %v401
    %v405 = vmul.f32 %v373, %v401
    %v406 = vadd.f32 %v396, %v402
    %v407 = vadd.f32 %v397, %v403
    %v408 = vadd.f32 %v398, %v404
    %v409 = vadd.f32 %v399, %v405
    %s410 = sld [smem:[#allocation2 + $0x30]]
    %v411 = vstv %s410
    %v412 = vadd.f32 %v406, %v411
    %v413 = vadd.f32 %v407, %v411
    %v414 = vadd.f32 %v408, %v411
    %v415 = vadd.f32 %v409, %v411
    %v416 = vmul.f32 %v412, 0.01
    %v417 = vmul.f32 %v413, 0.01
    %v418 = vmul.f32 %v414, 0.01
    %v419 = vmul.f32 %v415, 0.01
    %v420 = vmax.f32 %v412, %v416
    %v421 = vmax.f32 %v413, %v417
    %v422 = vmax.f32 %v414, %v418
    %v423 = vmax.f32 %v415, %v419
    %s424 = sld [smem:[#allocation2 + $0x21]]
    %v425 = vstv %s424
    %v426 = vmul.f32 %v220, %v425
    %v427 = vmul.f32 %v221, %v425
    %v428 = vmul.f32 %v222, %v425
    %v429 = vmul.f32 %v223, %v425
    %s430 = sld [smem:[#allocation2 + $0x25]]
    %v431 = vstv %s430
    %v432 = vmul.f32 %v270, %v431
    %v433 = vmul.f32 %v271, %v431
    %v434 = vmul.f32 %v272, %v431
    %v435 = vmul.f32 %v273, %v431
    %v436 = vadd.f32 %v426, %v432
    %v437 = vadd.f32 %v427, %v433
    %v438 = vadd.f32 %v428, %v434
    %v439 = vadd.f32 %v429, %v435
    %s440 = sld [smem:[#allocation2 + $0x29]]
    %v441 = vstv %s440
    %v442 = vmul.f32 %v320, %v441
    %v443 = vmul.f32 %v321, %v441
    %v444 = vmul.f32 %v322, %v441
    %v445 = vmul.f32 %v323, %v441
    %v446 = vadd.f32 %v436, %v442
    %v447 = vadd.f32 %v437, %v443
    %v448 = vadd.f32 %v438, %v444
    %v449 = vadd.f32 %v439, %v445
    %s450 = sld [smem:[#allocation2 + $0x2d]]
    %v451 = vstv %s450
    %v452 = vmul.f32 %v370, %v451
    %v453 = vmul.f32 %v371, %v451
    %v454 = vmul.f32 %v372, %v451
    %v455 = vmul.f32 %v373, %v451
    %v456 = vadd.f32 %v446, %v452
    %v457 = vadd.f32 %v447, %v453
    %v458 = vadd.f32 %v448, %v454
    %v459 = vadd.f32 %v449, %v455
    %s460 = sld [smem:[#allocation2 + $0x31]]
    %v461 = vstv %s460
    %v462 = vadd.f32 %v456, %v461
    %v463 = vadd.f32 %v457, %v461
    %v464 = vadd.f32 %v458, %v461
    %v465 = vadd.f32 %v459, %v461
    %v466 = vmul.f32 %v462, 0.01
    %v467 = vmul.f32 %v463, 0.01
    %v468 = vmul.f32 %v464, 0.01
    %v469 = vmul.f32 %v465, 0.01
    %v470 = vmax.f32 %v462, %v466
    %v471 = vmax.f32 %v463, %v467
    %v472 = vmax.f32 %v464, %v468
    %v473 = vmax.f32 %v465, %v469
    %s474 = sld [smem:[#allocation2 + $0x22]]
    %v475 = vstv %s474
    %v476 = vmul.f32 %v220, %v475
    %v477 = vmul.f32 %v221, %v475
    %v478 = vmul.f32 %v222, %v475
    %v479 = vmul.f32 %v223, %v475
    %s480 = sld [smem:[#allocation2 + $0x26]]
    %v481 = vstv %s480
    %v482 = vmul.f32 %v270, %v481
    %v483 = vmul.f32 %v271, %v481
    %v484 = vmul.f32 %v272, %v481
    %v485 = vmul.f32 %v273, %v481
    %v486 = vadd.f32 %v476, %v482
    %v487 = vadd.f32 %v477, %v483
    %v488 = vadd.f32 %v478, %v484
    %v489 = vadd.f32 %v479, %v485
    %s490 = sld [smem:[#allocation2 + $0x2a]]
    %v491 = vstv %s490
    %v492 = vmul.f32 %v320, %v491
    %v493 = vmul.f32 %v321, %v491
    %v494 = vmul.f32 %v322, %v491
    %v495 = vmul.f32 %v323, %v491
    %v496 = vadd.f32 %v486, %v492
    %v497 = vadd.f32 %v487, %v493
    %v498 = vadd.f32 %v488, %v494
    %v499 = vadd.f32 %v489, %v495
    %s500 = sld [smem:[#allocation2 + $0x2e]]
    %v501 = vstv %s500
    %v502 = vmul.f32 %v370, %v501
    %v503 = vmul.f32 %v371, %v501
    %v504 = vmul.f32 %v372, %v501
    %v505 = vmul.f32 %v373, %v501
    %v506 = vadd.f32 %v496, %v502
    %v507 = vadd.f32 %v497, %v503
    %v508 = vadd.f32 %v498, %v504
    %v509 = vadd.f32 %v499, %v505
    %s510 = sld [smem:[#allocation2 + $0x32]]
    %v511 = vstv %s510
    %v512 = vadd.f32 %v506, %v511
    %v513 = vadd.f32 %v507, %v511
    %v514 = vadd.f32 %v508, %v511
    %v515 = vadd.f32 %v509, %v511
    %v516 = vmul.f32 %v512, 0.01
    %v517 = vmul.f32 %v513, 0.01
    %v518 = vmul.f32 %v514, 0.01
    %v519 = vmul.f32 %v515, 0.01
    %v520 = vmax.f32 %v512, %v516
    %v521 = vmax.f32 %v513, %v517
    %v522 = vmax.f32 %v514, %v518
    %v523 = vmax.f32 %v515, %v519
    %s524 = sld [smem:[#allocation2 + $0x23]]
    %v525 = vstv %s524
    %v526 = vmul.f32 %v220, %v525
    %v527 = vmul.f32 %v221, %v525
    %v528 = vmul.f32 %v222, %v525
    %v529 = vmul.f32 %v223, %v525
    %s530 = sld [smem:[#allocation2 + $0x27]]
    %v531 = vstv %s530
    %v532 = vmul.f32 %v270, %v531
    %v533 = vmul.f32 %v271, %v531
    %v534 = vmul.f32 %v272, %v531
    %v535 = vmul.f32 %v273, %v531
    %v536 = vadd.f32 %v526, %v532
    %v537 = vadd.f32 %v527, %v533
    %v538 = vadd.f32 %v528, %v534
    %v539 = vadd.f32 %v529, %v535
    %s540 = sld [smem:[#allocation2 + $0x2b]]
    %v541 = vstv %s540
    %v542 = vmul.f32 %v320, %v541
    %v543 = vmul.f32 %v321, %v541
    %v544 = vmul.f32 %v322, %v541
    %v545 = vmul.f32 %v323, %v541
    %v546 = vadd.f32 %v536, %v542
    %v547 = vadd.f32 %v537, %v543
    %v548 = vadd.f32 %v538, %v544
    %v549 = vadd.f32 %v539, %v545
    %s550 = sld [smem:[#allocation2 + $0x2f]]
    %v551 = vstv %s550
    %v552 = vmul.f32 %v370, %v551
    %v553 = vmul.f32 %v371, %v551
    %v554 = vmul.f32 %v372, %v551
    %v555 = vmul.f32 %v373, %v551
    %v556 = vadd.f32 %v546, %v552
    %v557 = vadd.f32 %v547, %v553
    %v558 = vadd.f32 %v548, %v554
    %v559 = vadd.f32 %v549, %v555
    %s560 = sld [smem:[#allocation2 + $0x33]]
    %v561 = vstv %s560
    %v562 = vadd.f32 %v556, %v561
    %v563 = vadd.f32 %v557, %v561
    %v564 = vadd.f32 %v558, %v561
    %v565 = vadd.f32 %v559, %v561
    %v566 = vmul.f32 %v562, 0.01
    %v567 = vmul.f32 %v563, 0.01
    %v568 = vmul.f32 %v564, 0.01
    %v569 = vmul.f32 %v565, 0.01
    %v570 = vmax.f32 %v562, %v566
    %v571 = vmax.f32 %v563, %v567
    %v572 = vmax.f32 %v564, %v568
    %v573 = vmax.f32 %v565, %v569
    %s574 = sld [smem:[#allocation2 + $0x34]]
    %v575 = vstv %s574
    %v576 = vmul.f32 %v420, %v575
    %v577 = vmul.f32 %v421, %v575
    %v578 = vmul.f32 %v422, %v575
    %v579 = vmul.f32 %v423, %v575
    %s580 = sld [smem:[#allocation2 + $0x35]]
    %v581 = vstv %s580
    %v582 = vmul.f32 %v470, %v581
    %v583 = vmul.f32 %v471, %v581
    %v584 = vmul.f32 %v472, %v581
    %v585 = vmul.f32 %v473, %v581
    %v586 = vadd.f32 %v576, %v582
    %v587 = vadd.f32 %v577, %v583
    %v588 = vadd.f32 %v578, %v584
    %v589 = vadd.f32 %v579, %v585
    %s590 = sld [smem:[#allocation2 + $0x36]]
    %v591 = vstv %s590
    %v592 = vmul.f32 %v520, %v591
    %v593 = vmul.f32 %v521, %v591
    %v594 = vmul.f32 %v522, %v591
    %v595 = vmul.f32 %v523, %v591
    %v596 = vadd.f32 %v586, %v592
    %v597 = vadd.f32 %v587, %v593
    %v598 = vadd.f32 %v588, %v594
    %v599 = vadd.f32 %v589, %v595
    %s600 = sld [smem:[#allocation2 + $0x37]]
    %v601 = vstv %s600
    %v602 = vmul.f32 %v570, %v601
    %v603 = vmul.f32 %v571, %v601
    %v604 = vmul.f32 %v572, %v601
    %v605 = vmul.f32 %v573, %v601
    %v606 = vadd.f32 %v596, %v602
    %v607 = vadd.f32 %v597, %v603
    %v608 = vadd.f32 %v598, %v604
    %v609 = vadd.f32 %v599, %v605
    %s610 = sld [smem:[#allocation2 + $0x38]]
    %v611 = vstv %s610
    %v612 = vadd.f32 %v606, %v611
    %v613 = vadd.f32 %v607, %v611
    %v614 = vadd.f32 %v608, %v611
    %v615 = vadd.f32 %v609, %v611
    %s616 = smul.addr %s24, 8
    %s617 = scalar_lea.vmem %s2, %s616
    %618 = vst [vmem:[%s617] sm:$0xff] %v612
    %619 = vst [vmem:[%s617 + $0x8] sm:$0xff] %v613
    %620 = vst [vmem:[%s617 + $0x10] sm:$0xff] %v614
    %621 = vst [vmem:[%s617 + $0x18] sm:$0xff] %v615
    // Predicated region
    $region14: #{_lsd_forward_jit.1} parent=1 // pred_check
      _
    $region15: #{_lsd_forward_jit.1} parent=1 // pred_check_branch
      %623 = sbr.rel (0) target = $region17
    $region16: #{_lsd_forward_jit.1} parent=1 // pred_region
      _
    $region17: #{_lsd_forward_jit.1} parent=1 // pred_fallthru
      _
    // Predicated region
    $region18: #{_lsd_forward_jit.1} parent=1 // pred_check
      _
    $region19: #{_lsd_forward_jit.1} parent=1 // pred_check_branch
      %625 = sbr.rel (0) target = $region21
    $region20: #{_lsd_forward_jit.1} parent=1 // pred_region
      _
    $region21: #{_lsd_forward_jit.1} parent=1 // pred_fallthru
      _
    %626 = vsyncpa [#allocation3], 1

</llo_original>
